<compile_context>
chip_gen: v5e
topology: v5e:2x2
jax: 0.10.0
libtpu: 0.0.40
codegen_flags: <defaults>
</compile_context>

<pallas_src>
import functools

import jax
import jax.numpy as jnp
from jax.experimental import pallas as pl
from jax.experimental.pallas import tpu as pltpu


def _concat_pool_kernel(x_ref, out_ref, max_acc, sum_acc, *, inv_hw, n_chunks, cw):
    """Process one (tr, thw) input tile.

    Grid = (row-tile, spatial-tile).  The spatial axis is a reduction:
    lane-parallel running max / sum live in f32 VMEM scratch of shape (tr, cw);
    the cross-lane reduce + store happen only on the last spatial step.
    """
    k = pl.program_id(1)

    # Fused single pass over 128-lane chunks: one load and one f32 cast per
    # chunk.  Max stays in the native input dtype (bf16 is native on the VPU
    # for v6e/v7x); only the sum accumulates in f32.
    m = x_ref[:, 0:cw]
    s = m.astype(jnp.float32)
    for i in range(1, n_chunks):
        c = x_ref[:, i * cw:(i + 1) * cw]
        m = jnp.maximum(m, c)
        s = s + c.astype(jnp.float32)
    m32 = m.astype(jnp.float32)

    @pl.when(k == 0)
    def _init():
        max_acc[...] = m32
        sum_acc[...] = s

    @pl.when(k > 0)
    def _update():
        max_acc[...] = jnp.maximum(max_acc[...], m32)
        sum_acc[...] = sum_acc[...] + s

    @pl.when(k == pl.num_programs(1) - 1)
    def _finalize():
        # Single cross-lane (XLU) reduce cw -> 1, only once per row tile.
        mx = jnp.max(max_acc[...], axis=-1, keepdims=True)            # (tr, 1)
        av = jnp.sum(sum_acc[...], axis=-1, keepdims=True) * inv_hw   # (tr, 1)
        out_ref[:, 0:1] = mx.astype(out_ref.dtype)
        out_ref[:, 1:2] = av.astype(out_ref.dtype)


def _pick_tile(dim, unit, max_tile):
    """Largest tile <= max_tile that is a multiple of `unit` and divides `dim`;
    falls back to the full dimension (always a legal BlockSpec block)."""
    if dim <= max_tile:
        return dim
    t = (max_tile // unit) * unit
    while t >= unit:
        if dim % t == 0:
            return t
        t -= unit
    return dim


def _lane_pad(n):
    return ((n + 127) // 128) * 128


def adaptive_concat_pool2d(x, *, target_tile_bytes=8 << 20,
                           max_spatial_tile=2048, max_row_tile=None):
    """x: (N, C, H, W) -> (N, 2*C, 1, 1), [max_pool | avg_pool] along channels."""
    N, C, H, W = x.shape
    HW = H * W
    NC = N * C
    x_rows = x.reshape(NC, HW)                      # free reshape (row-major NCHW)
    itemsize = jnp.dtype(x.dtype).itemsize

    # Sublane unit is packing-aware: 8 for 32-bit, 16 for bf16, 32 for 8-bit.
    unit = max(8, 32 // max(itemsize, 1))

    # Spatial (lane) tile: multiple of 128 (or full HW).  Capped so the
    # in-kernel unrolled chunk loop stays short (<= 16 chunks of 128 lanes).
    thw_cap = min(max_spatial_tile,
                  max(128, target_tile_bytes // (unit * itemsize)))
    thw = _pick_tile(HW, 128, thw_cap)

    # Lane chunking for the accumulators.
    if thw % 128 == 0:
        cw, n_chunks = 128, thw // 128
    else:
        cw, n_chunks = thw, 1                       # small / odd HW: one chunk

    padded_thw = _lane_pad(thw)
    # Per-row VMEM cost: double-buffered input block + two f32 accumulators
    # + double-buffered (tr, 2) output block (lane-padded to 128).
    bytes_per_row_vmem = (2 * padded_thw * itemsize
                          + 2 * _lane_pad(cw) * 4
                          + 2 * 128 * itemsize)

    # Row (= N*C) tile: sized so each step moves ~target_tile_bytes of data
    # while the total VMEM footprint stays ~32 MiB (safe on every generation,
    # incl. v7x's 64 MiB physical VMEM).
    footprint_budget = 32 << 20
    rows_by_footprint = footprint_budget // bytes_per_row_vmem
    rows_by_data = target_tile_bytes // max(thw * itemsize, 1)
    tr_cap = max(unit, int(min(rows_by_footprint, rows_by_data)) // unit * unit)
    if max_row_tile is not None:
        tr_cap = min(tr_cap, max(unit, max_row_tile))
    tr = _pick_tile(NC, unit, tr_cap)

    # Prefer >= 2 row tiles so the "parallel" grid axis can shard across both
    # TensorCores on v7x (single-TC chips are unaffected).
    if NC // tr < 2 and tr > unit:
        half = _pick_tile(NC, unit, max(unit, tr // 2))
        if half < tr and NC // half >= 2:
            tr = half

    grid = (NC // tr, HW // thw)

    # Scoped-VMEM limit: what we actually need (+slack), clamped to 3/4 of
    # physical VMEM (48 MiB on v7x, 96 MiB on v5e/v6e).
    try:
        phys_vmem = int(pltpu.get_tpu_info().vmem_capacity_bytes)
    except Exception:
        phys_vmem = 64 << 20
    vmem_ceiling = max(48 << 20, (phys_vmem * 3) // 4)
    needed = tr * bytes_per_row_vmem + (4 << 20)
    vmem_limit = int(min(max(needed, 32 << 20), vmem_ceiling))

    kernel = functools.partial(_concat_pool_kernel, inv_hw=1.0 / float(HW),
                               n_chunks=n_chunks, cw=cw)

    out = pl.pallas_call(
        kernel,
        out_shape=jax.ShapeDtypeStruct((NC, 2), x.dtype),
        grid_spec=pltpu.PrefetchScalarGridSpec(
            num_scalar_prefetch=0,
            grid=grid,
            in_specs=[pl.BlockSpec((tr, thw), lambda r, k: (r, k))],
            out_specs=pl.BlockSpec((tr, 2), lambda r, k: (r, 0)),
            scratch_shapes=[
                pltpu.VMEM((tr, cw), jnp.float32),   # lane-parallel running max
                pltpu.VMEM((tr, cw), jnp.float32),   # lane-parallel running sum
            ],
        ),
        compiler_params=pltpu.CompilerParams(
            dimension_semantics=("parallel", "arbitrary"),
            vmem_limit_bytes=vmem_limit,
        ),
        cost_estimate=pl.CostEstimate(
            flops=2 * NC * HW,
            transcendentals=0,
            bytes_accessed=NC * HW * itemsize + NC * 2 * itemsize,
        ),
    )(x_rows)

    # (N*C, 2) -> (N, 2*C, 1, 1): first C channels = max, next C = avg.
    return out.reshape(N, C, 2).transpose(0, 2, 1).reshape(N, 2 * C, 1, 1)


if __name__ == "__main__":
    key = jax.random.PRNGKey(0)
    N, C, H, W = 2, 4, 16, 16
    x = jax.random.normal(key, (N, C, H, W), dtype=jnp.float32)

    ref = jnp.concatenate(
        [jnp.max(x, axis=(2, 3), keepdims=True),
         jnp.mean(x, axis=(2, 3), keepdims=True)],
        axis=1,
    )

    # Default tiling (whole 16x16=256 spatial extent per step, 2 lane chunks).
    out = jax.block_until_ready(adaptive_concat_pool2d(x))
    assert out.shape == (N, 2 * C, 1, 1), out.shape
    assert jnp.allclose(out, ref, atol=1e-5, rtol=1e-5), "f32 mismatch"

    # Force spatial tiling (two 128-lane steps) to exercise the accumulator /
    # multi-step reduction path of the same kernel.
    out_tiled = jax.block_until_ready(
        adaptive_concat_pool2d(x, max_spatial_tile=128))
    assert jnp.allclose(out_tiled, ref, atol=1e-5, rtol=1e-5), "tiled mismatch"

    # Larger channel count + forced row tiling: exercises the batch+channel
    # row-folding and the row ("parallel") grid axis.
    N2, C2, H2, W2 = 2, 64, 16, 16
    x2 = jax.random.normal(jax.random.PRNGKey(1), (N2, C2, H2, W2), jnp.float32)
    ref2 = jnp.concatenate(
        [jnp.max(x2, axis=(2, 3), keepdims=True),
         jnp.mean(x2, axis=(2, 3), keepdims=True)],
        axis=1,
    )
    out2 = jax.block_until_ready(
        adaptive_concat_pool2d(x2, max_row_tile=32, max_spatial_tile=128))
    assert out2.shape == (N2, 2 * C2, 1, 1), out2.shape
    assert jnp.allclose(out2, ref2, atol=1e-5, rtol=1e-5), "row-tiled mismatch"

    # bf16 input: max in native bf16, mean accumulated in f32 inside the kernel.
    xb = x.astype(jnp.bfloat16)
    ref_bf16 = jnp.concatenate(
        [jnp.max(xb.astype(jnp.float32), axis=(2, 3), keepdims=True),
         jnp.mean(xb.astype(jnp.float32), axis=(2, 3), keepdims=True)],
        axis=1,
    ).astype(jnp.bfloat16)
    out_bf16 = jax.block_until_ready(
        adaptive_concat_pool2d(xb, max_spatial_tile=128))
    assert out_bf16.shape == (N, 2 * C, 1, 1), out_bf16.shape
    assert jnp.allclose(out_bf16.astype(jnp.float32),
                        ref_bf16.astype(jnp.float32),
                        atol=2e-2, rtol=2e-2), "bf16 mismatch"

    print("KERNEL_OK")
</pallas_src>

<mosaic_0001>
module attributes {stable_mosaic.version = 11 : i64} {
  func.func @_concat_pool_kernel(%arg0: i32, %arg1: i32, %arg2: memref<8x256xf32, #tpu.memory_space<vmem>>, %arg3: memref<8x2xf32, #tpu.memory_space<vmem>>, %arg4: memref<8x128xf32, #tpu.memory_space<vmem>>, %arg5: memref<8x128xf32, #tpu.memory_space<vmem>>) attributes {dimension_semantics = [#tpu.dimension_semantics<parallel>, #tpu.dimension_semantics<arbitrary>], iteration_bounds = array<i64: 1, 1>, scalar_prefetch = 0 : i64, scratch_operands = 2 : i64, tpu.core_type = #tpu.core_type<tc>, window_params = [{transform_indices = @transform_0, window_bounds = array<i64: 8, 256>}, {transform_indices = @transform_1, window_bounds = array<i64: 8, 2>}]} {
    %c0 = arith.constant 0 : index
    %c0_0 = arith.constant 0 : index
    %0 = vector.load %arg2[%c0, %c0_0] : memref<8x256xf32, #tpu.memory_space<vmem>>, vector<8x128xf32>
    %c0_1 = arith.constant 0 : index
    %c128 = arith.constant 128 : index
    %1 = vector.load %arg2[%c0_1, %c128] : memref<8x256xf32, #tpu.memory_space<vmem>>, vector<8x128xf32>
    %2 = arith.maximumf %0, %1 : vector<8x128xf32>
    %3 = arith.addf %0, %1 : vector<8x128xf32>
    %c0_i32 = arith.constant 0 : i32
    %4 = arith.cmpi eq, %arg1, %c0_i32 : i32
    %5 = arith.extui %4 : i1 to i32
    %c0_i32_2 = arith.constant 0 : i32
    %6 = arith.cmpi ne, %5, %c0_i32_2 : i32
    scf.if %6 {
      %c0_7 = arith.constant 0 : index
      %c0_8 = arith.constant 0 : index
      %13 = vector.load %arg4[%c0_7, %c0_8] : memref<8x128xf32, #tpu.memory_space<vmem>>, vector<8x128xf32>
      tpu.vector_store %arg4[%c0_7, %c0_8], %2 {strides = array<i32>} : memref<8x128xf32, #tpu.memory_space<vmem>>, vector<8x128xf32>,
      %c0_9 = arith.constant 0 : index
      %c0_10 = arith.constant 0 : index
      %14 = vector.load %arg5[%c0_9, %c0_10] : memref<8x128xf32, #tpu.memory_space<vmem>>, vector<8x128xf32>
      tpu.vector_store %arg5[%c0_9, %c0_10], %3 {strides = array<i32>} : memref<8x128xf32, #tpu.memory_space<vmem>>, vector<8x128xf32>,
    } else {
    }
    %c0_i32_3 = arith.constant 0 : i32
    %7 = arith.cmpi sgt, %arg1, %c0_i32_3 : i32
    %8 = arith.extui %7 : i1 to i32
    %c0_i32_4 = arith.constant 0 : i32
    %9 = arith.cmpi ne, %8, %c0_i32_4 : i32
    scf.if %9 {
      %c0_7 = arith.constant 0 : index
      %c0_8 = arith.constant 0 : index
      %13 = vector.load %arg4[%c0_7, %c0_8] : memref<8x128xf32, #tpu.memory_space<vmem>>, vector<8x128xf32>
      %14 = arith.maximumf %13, %2 : vector<8x128xf32>
      %c0_9 = arith.constant 0 : index
      %c0_10 = arith.constant 0 : index
      %15 = vector.load %arg4[%c0_9, %c0_10] : memref<8x128xf32, #tpu.memory_space<vmem>>, vector<8x128xf32>
      tpu.vector_store %arg4[%c0_9, %c0_10], %14 {strides = array<i32>} : memref<8x128xf32, #tpu.memory_space<vmem>>, vector<8x128xf32>,
      %c0_11 = arith.constant 0 : index
      %c0_12 = arith.constant 0 : index
      %16 = vector.load %arg5[%c0_11, %c0_12] : memref<8x128xf32, #tpu.memory_space<vmem>>, vector<8x128xf32>
      %17 = arith.addf %16, %3 : vector<8x128xf32>
      %c0_13 = arith.constant 0 : index
      %c0_14 = arith.constant 0 : index
      %18 = vector.load %arg5[%c0_13, %c0_14] : memref<8x128xf32, #tpu.memory_space<vmem>>, vector<8x128xf32>
      tpu.vector_store %arg5[%c0_13, %c0_14], %17 {strides = array<i32>} : memref<8x128xf32, #tpu.memory_space<vmem>>, vector<8x128xf32>,
    } else {
    }
    %c0_i32_5 = arith.constant 0 : i32
    %10 = arith.cmpi eq, %arg1, %c0_i32_5 : i32
    %11 = arith.extui %10 : i1 to i32
    %c0_i32_6 = arith.constant 0 : i32
    %12 = arith.cmpi ne, %11, %c0_i32_6 : i32
    scf.if %12 {
      %c0_7 = arith.constant 0 : index
      %c0_8 = arith.constant 0 : index
      %13 = vector.load %arg4[%c0_7, %c0_8] : memref<8x128xf32, #tpu.memory_space<vmem>>, vector<8x128xf32>
      %cst = arith.constant dense<0xFF800000> : vector<8xf32>
      %14 = vector.multi_reduction <maximumf>, %13, %cst [1] : vector<8x128xf32> to vector<8xf32>
      %15 = vector.shape_cast %14 : vector<8xf32> to vector<8x1xf32>
      %c0_9 = arith.constant 0 : index
      %c0_10 = arith.constant 0 : index
      %16 = vector.load %arg5[%c0_9, %c0_10] : memref<8x128xf32, #tpu.memory_space<vmem>>, vector<8x128xf32>
      %cst_11 = arith.constant dense<0.000000e+00> : vector<8xf32>
      %17 = vector.multi_reduction <add>, %16, %cst_11 [1] : vector<8x128xf32> to vector<8xf32>
      %18 = vector.shape_cast %17 : vector<8xf32> to vector<8x1xf32>
      %cst_12 = arith.constant 3.906250e-03 : f32
      %19 = vector.broadcast %cst_12 : f32 to vector<8x1xf32>
      %20 = arith.mulf %18, %19 : vector<8x1xf32>
      %c0_13 = arith.constant 0 : index
      %c0_14 = arith.constant 0 : index
      %21 = vector.load %arg3[%c0_13, %c0_14] : memref<8x2xf32, #tpu.memory_space<vmem>>, vector<8x1xf32>
      tpu.vector_store %arg3[%c0_13, %c0_14], %15 {strides = array<i32>} : memref<8x2xf32, #tpu.memory_space<vmem>>, vector<8x1xf32>,
      %c0_15 = arith.constant 0 : index
      %c1 = arith.constant 1 : index
      %22 = vector.load %arg3[%c0_15, %c1] : memref<8x2xf32, #tpu.memory_space<vmem>>, vector<8x1xf32>
      tpu.vector_store %arg3[%c0_15, %c1], %20 {strides = array<i32>} : memref<8x2xf32, #tpu.memory_space<vmem>>, vector<8x1xf32>,
    } else {
    }
    return
  }
  func.func @transform_0(%arg0: i32, %arg1: i32) -> (i32, i32) {
    %c0_i32 = arith.constant 0 : i32
    return %arg0, %arg1 : i32, i32
  }
  func.func @transform_1(%arg0: i32, %arg1: i32) -> (i32, i32) {
    %c0_i32 = arith.constant 0 : i32
    %c0_i32_0 = arith.constant 0 : i32
    return %arg0, %c0_i32 : i32, i32
  }
}

</mosaic_0001>

<llo_original>
// kernel: tpu_custom_call.1
$region0: #{tpu_custom_call.1}
  #allocation0 [shape = 'u32[]', space=smem, size = 0x4, offset = 0x4, fixed_abs, tag = 'smem constant byte address 0x4 - core index']
  #allocation1 [shape = 'u32[72,128]{1,0:T(1,128)}', space=vmem, size = 0x9000, scoped, tag = 'internal scratch']
  #allocation2 [shape = 'f32[8,128]{1,0:T(8,128)}', space=vmem, size = 0x1000, scoped, tag = 'scratch operand']
  #allocation3 [shape = 'f32[8,128]{1,0:T(8,128)}', space=vmem, size = 0x1000, scoped, tag = 'scratch operand']
  %s0 = inlined_call_operand.hbm [shape: f32[8,256], index: 0, kind: input, shape index: {}]
  %s1 = inlined_call_operand.vmem [shape: f32[8,2], index: 1, kind: output, shape index: {}]
  %s2 = sld [smem:[#allocation0]]
  $region30: #{tpu_custom_call.1} parent=0
    _
  %s4 = ssub.s32 1, %s2
  %s5 = scalar_select 0, %s4, %s2
  $region1: #{tpu_custom_call.1} parent=0
    #allocation4 [shape = 'u8[8192]{0}', space=vmem, size = 0x2000, scoped, tag = 'input window, operand 0, single buffered']
    #allocation5 [shape = 's32[1]{0}', space=sflag, size = 0x4, scoped, tag = 'scoped memory for tpu_custom_call.1']
    %6 = vsyncpa [#allocation5], 0
    // Predicated region
    $region2: #{tpu_custom_call.1} parent=1 // pred_check
      _
    $region3: #{tpu_custom_call.1} parent=1 // pred_check_branch
      %8 = sbr.rel (0) target = $region5
    $region4: #{tpu_custom_call.1} parent=1 // pred_region
      %10 = vsyncadd [#allocation5], 0
      %s12 = sshll.u32 %s0, 4
      %s13 = int_to_ptr.hbm [resolvable:$true] %s12
      %s14 = sshll.u32 [#allocation4], 4
      %s15 = int_to_ptr.vmem [resolvable:$true] %s14
      %17 = dma.hbm_to_vmem [thread:$0]  %s13, 256, %s15, [#allocation5]
    $region5: #{tpu_custom_call.1} parent=1 // pred_fallthru
      _
    // Predicated region
    $region6: #{tpu_custom_call.1} parent=1 // pred_check
      _
    $region7: #{tpu_custom_call.1} parent=1 // pred_check_branch
      %19 = sbr.rel (0) target = $region9
    $region8: #{tpu_custom_call.1} parent=1 // pred_region
      %21 = dma.done [#allocation5], 256
    $region9: #{tpu_custom_call.1} parent=1 // pred_fallthru
      _
    %v22 = vld [vmem:[#allocation4] sm:$0xff]
    %v23 = vld [vmem:[#allocation4 + $0x8] sm:$0xff]
    %v24 = vmax.f32 %v22, %v23
    %v25 = vadd.f32 %v22, %v23
    %p26 = scmp.eq.s32.totalorder 0, 0
    // Predicated region
    $region10: #{tpu_custom_call.1} parent=1 // pred_check
      %p27 = pneg %p26
    $region11: #{tpu_custom_call.1} parent=1 // pred_check_branch
      %29 = sbr.rel (%p27) target = $region13
    $region12: #{tpu_custom_call.1} parent=1 // pred_region
      %30 = vst [vmem:[#allocation2] sm:$0xff] %v24
      %31 = vst [vmem:[#allocation3] sm:$0xff] %v25
    $region13: #{tpu_custom_call.1} parent=1 // pred_fallthru
      _
    %p32 = scmp.gt.s32.totalorder 0, 0
    // Predicated region
    $region14: #{tpu_custom_call.1} parent=1 // pred_check
      %p33 = pneg %p32
    $region15: #{tpu_custom_call.1} parent=1 // pred_check_branch
      %35 = sbr.rel (%p33) target = $region17
    $region16: #{tpu_custom_call.1} parent=1 // pred_region
      %v36 = vld [vmem:[#allocation2] sm:$0xff]
      %v37 = vmax.f32 %v36, %v24
      %38 = vst [vmem:[#allocation2] sm:$0xff] %v37
      %v39 = vld [vmem:[#allocation3] sm:$0xff]
      %v40 = vadd.f32 %v39, %v25
      %41 = vst [vmem:[#allocation3] sm:$0xff] %v40
    $region17: #{tpu_custom_call.1} parent=1 // pred_fallthru
      _
    // Predicated region
    $region18: #{tpu_custom_call.1} parent=1 // pred_check
      %p42 = pneg %p26
    $region19: #{tpu_custom_call.1} parent=1 // pred_check_branch
      %44 = sbr.rel (%p42) target = $region21
    $region20: #{tpu_custom_call.1} parent=1 // pred_region
      %v45 = vld [vmem:[#allocation2] sm:$0xff]
      %46 = vmax.xlane.f32.xlu0 %v45
      %v47 = vpop.xlane.xlu0 %46
      %v48 = vld [vmem:[#allocation3] sm:$0xff]
      %49 = vadd.xlane.f32.xlu0 %v48
      %v50 = vpop.xlane.xlu0 %49
      %v51 = vmul.f32 %v50, 0.00390625
      %vm52 = vcmask 7168
      %53 = vst.msk [vmem:[%s1] sm:$0xff] %vm52, %v47
      %vm54 = vcmask 15368
      %55 = vst.msk [vmem:[%s1] sm:$0xff] %vm54, %v51
    $region21: #{tpu_custom_call.1} parent=1 // pred_fallthru
      _
    // Predicated region
    $region22: #{tpu_custom_call.1} parent=1 // pred_check
      _
    $region23: #{tpu_custom_call.1} parent=1 // pred_check_branch
      %57 = sbr.rel (0) target = $region25
    $region24: #{tpu_custom_call.1} parent=1 // pred_region
      _
    $region25: #{tpu_custom_call.1} parent=1 // pred_fallthru
      _
    // Predicated region
    $region26: #{tpu_custom_call.1} parent=1 // pred_check
      _
    $region27: #{tpu_custom_call.1} parent=1 // pred_check_branch
      %59 = sbr.rel (0) target = $region29
    $region28: #{tpu_custom_call.1} parent=1 // pred_region
      _
    $region29: #{tpu_custom_call.1} parent=1 // pred_fallthru
      _
    %60 = vsyncpa [#allocation5], 1

</llo_original>
